<compile_context>
chip_gen: v6e
topology: v6e:2x2x1
jax: 0.10.0
libtpu: 0.0.40
codegen_flags: <defaults>
</compile_context>

<pallas_src>
import functools

import jax
import jax.numpy as jnp
from jax.experimental import pallas as pl
from jax.experimental.pallas import tpu as pltpu


_VMEM_LIMIT_BYTES = 32 * 1024 * 1024   # safe on v5e/v6e/v7x; blocks use <=8 MiB

_AFFINE_LANES = 1024                   # lane width of the 2-D elementwise slab
_AFFINE_ROWS = 512                     # 512*1024*4 B = 2 MiB per block
_AFFINE_RAGGED_LANES = 64 * 1024       # ragged (1, n) fallback: 256 KiB blocks

_SOFTMAX_PACKED_ROWS = 2048            # (2048, 128) f32 = 1 MiB per block
_SOFTMAX_BLOCK_BYTES = 2 * 1024 * 1024


def _compiler_params():
    return pltpu.CompilerParams(
        dimension_semantics=("parallel",),
        vmem_limit_bytes=_VMEM_LIMIT_BYTES,
    )


def _round_up(v, m):
    return ((v + m - 1) // m) * m


def _sublane_multiple(dtype):
    # f32 -> 8, bf16 -> 16, int8/fp8 -> 32 (native sublane packing).
    return max(8, 32 // max(1, jnp.dtype(dtype).itemsize))


def _pick_tile_rows(rows, max_rows, mult=8):
    """Row-tile: multiple of `mult` (or == rows), <= max_rows, and >= 2 grid
    steps when the input allows it so the 'parallel' grid axis can shard
    across v7x's two TensorCores."""
    if rows <= mult:
        return rows
    half = _round_up(pl.cdiv(rows, 2), mult)
    tile = min(max_rows, half)
    return max(mult, (tile // mult) * mult)


# ----------------------------------------------------------------------------
# Pallas kernels
# ----------------------------------------------------------------------------
def _affine_relu_kernel(sb_ref, x_ref, o_ref):
    # Elementwise relu(x * scale + bias); scale/bias read from SMEM (free
    # scalar-slot loads, no Mosaic recompile per constant).
    scale = sb_ref[0]
    bias = sb_ref[1]
    y = x_ref[...].astype(jnp.float32) * scale + bias
    o_ref[...] = jnp.maximum(y, 0.0).astype(o_ref.dtype)


def _softmax_packed_kernel(x_ref, o_ref, *, w, pack):
    # x_ref/o_ref: (tile_r, pack*w) with pack = 128 // w independent softmax
    # rows packed per 128-lane group.  One full-width load/exp/multiply/store;
    # only the per-segment max/sum run on narrow lane slices (cheap filler).
    rows = x_ref.shape[0]
    x = x_ref[...].astype(jnp.float32)                     # one full-width load
    m_full = jnp.concatenate(
        [jnp.broadcast_to(
            jnp.max(x[:, s * w:(s + 1) * w], axis=-1, keepdims=True), (rows, w))
         for s in range(pack)], axis=-1)
    e = jnp.exp(x - m_full)                                # ONE full-width exp
    inv_full = jnp.concatenate(
        [jnp.broadcast_to(
            1.0 / jnp.sum(e[:, s * w:(s + 1) * w], axis=-1, keepdims=True),
            (rows, w))
         for s in range(pack)], axis=-1)                   # exact reciprocals
    o_ref[...] = (e * inv_full).astype(o_ref.dtype)        # ONE unmasked store


def _softmax_rows_kernel(x_ref, o_ref):
    # Numerically-stable softmax over the last (lane) axis of the block.
    x = x_ref[...].astype(jnp.float32)
    m = jnp.max(x, axis=-1, keepdims=True)
    e = jnp.exp(x - m)
    d = jnp.sum(e, axis=-1, keepdims=True)
    o_ref[...] = (e * (1.0 / d)).astype(o_ref.dtype)       # exact division


# ----------------------------------------------------------------------------
# Pallas-backed functions usable as `func` in CustomLayer
# ----------------------------------------------------------------------------
def pallas_affine_relu(x, scale, bias=0.0):
    """relu(x * scale + bias), elementwise.  Works for any shape / size."""
    orig_shape = x.shape
    orig_dtype = x.dtype
    n = x.size
    itemsize = jnp.dtype(orig_dtype).itemsize
    mult = _sublane_multiple(orig_dtype)

    sb = jnp.stack([jnp.asarray(scale, jnp.float32),
                    jnp.asarray(bias, jnp.float32)])
    smem_spec = pl.BlockSpec(memory_space=pltpu.MemorySpace.SMEM)
    cost = pl.CostEstimate(flops=3 * n, transcendentals=0,
                           bytes_accessed=2 * n * itemsize)

    lanes = next((c for c in (1024, 512, 256, 128) if n % c == 0), None)
    if lanes is not None:
        # Lane-dense 2-D view with NO pad/unpad copies; ragged row tail of the
        # last grid step is handled by Pallas' masked edge blocks.
        rows = n // lanes
        x2 = x.reshape(rows, lanes)
        tile_r = _pick_tile_rows(rows, _AFFINE_ROWS, mult)
        grid = (pl.cdiv(rows, tile_r),)
        blk = pl.BlockSpec((tile_r, lanes), lambda i: (i, 0))
    else:
        # TODO(synk): truly ragged sizes use a copy-free (1, n) lane-major view
        # (sublane-sparse blocks); a manual-DMA kernel with pl.ds tail masking
        # would be denser if this path ever becomes hot.
        x2 = x.reshape(1, n)
        lane_tile = min(_AFFINE_RAGGED_LANES, _round_up(n, 128))
        grid = (pl.cdiv(n, lane_tile),)
        blk = pl.BlockSpec((1, lane_tile), lambda i: (0, i))

    out = pl.pallas_call(
        _affine_relu_kernel,
        out_shape=jax.ShapeDtypeStruct(x2.shape, orig_dtype),
        grid=grid,
        in_specs=[smem_spec, blk],
        out_specs=blk,
        compiler_params=_compiler_params(),
        cost_estimate=cost,
    )(sb, x2)
    return out.reshape(orig_shape)


def pallas_softmax_lastdim(x, dim=-1):
    """softmax over the last axis (matches F.softmax(x, dim=-1))."""
    assert dim in (-1, x.ndim - 1), "kernel implements softmax over the last axis"
    orig_shape = x.shape
    orig_dtype = x.dtype
    w = orig_shape[-1]
    n = x.size
    r = n // w
    itemsize = jnp.dtype(orig_dtype).itemsize
    mult = _sublane_multiple(orig_dtype)
    cost = pl.CostEstimate(flops=5 * n, transcendentals=n,
                           bytes_accessed=2 * n * itemsize)
    x2 = x.reshape(r, w)

    if w <= 128:
        # Pack 128 // w_pad rows per 128-lane group -> every DMA, exp and
        # store is 128-lane dense.  Non-divisor W is padded per-row with -inf
        # (exp(-inf)=0 leaves the row sums untouched).
        w_pad = max(1, int(pl.next_power_of_2(w)))
        if w_pad != w:
            x2 = jnp.pad(x2, ((0, 0), (0, w_pad - w)),
                         constant_values=-jnp.inf)
        pack = 128 // w_pad
        rem = r % pack
        if rem:
            # TODO(synk): <pack-row tail pad (tiny copy); padded rows dropped.
            x2 = jnp.concatenate(
                [x2, jnp.zeros((pack - rem, w_pad), x2.dtype)], axis=0)
        r2 = x2.shape[0] // pack
        xp = x2.reshape(r2, pack * w_pad)

        tile_r = _pick_tile_rows(r2, _SOFTMAX_PACKED_ROWS, mult)
        out = pl.pallas_call(
            functools.partial(_softmax_packed_kernel, w=w_pad, pack=pack),
            out_shape=jax.ShapeDtypeStruct(xp.shape, orig_dtype),
            grid=(pl.cdiv(r2, tile_r),),
            in_specs=[pl.BlockSpec((tile_r, pack * w_pad), lambda i: (i, 0))],
            out_specs=pl.BlockSpec((tile_r, pack * w_pad), lambda i: (i, 0)),
            compiler_params=_compiler_params(),
            cost_estimate=cost,
        )(xp)
        res = out.reshape(-1, w_pad)
        if w_pad != w:
            res = res[:, :w]
        if rem:
            res = res[:r]
        return res.reshape(orig_shape)

    # General path (W > 128): W stays on the lane axis as the full last dim;
    # tile rows.  Block bytes sized from the LANE-PADDED row width so the
    # double-buffered working set stays ~8 MiB on every generation; the
    # ragged last row-block is handled by Pallas (no wrapper pad copies).
    bytes_per_row = _round_up(w, 128) * max(4, itemsize)
    max_rows = max(mult,
                   ((_SOFTMAX_BLOCK_BYTES // bytes_per_row) // mult) * mult)
    tile_r = _pick_tile_rows(r, max_rows, mult)
    out = pl.pallas_call(
        _softmax_rows_kernel,
        out_shape=jax.ShapeDtypeStruct((r, w), orig_dtype),
        grid=(pl.cdiv(r, tile_r),),
        in_specs=[pl.BlockSpec((tile_r, w), lambda i: (i, 0))],
        out_specs=pl.BlockSpec((tile_r, w), lambda i: (i, 0)),
        compiler_params=_compiler_params(),
        cost_estimate=cost,
    )(x2)
    return out.reshape(orig_shape)


# ----------------------------------------------------------------------------
# CustomLayer equivalent (JAX) -- forward(x) = func(x, *args, **kwargs)
# ----------------------------------------------------------------------------
class CustomLayer:
    """任意の計算が可能な層 — JAX/Pallas port of the PyTorch module."""

    def __init__(self, func, *args, **kwargs):
        self.func = func
        self.args = args
        self.kwargs = kwargs

    def __call__(self, x):
        return self.func(x, *self.args, **self.kwargs)


# ----------------------------------------------------------------------------
# Demo / correctness check
# ----------------------------------------------------------------------------
if __name__ == "__main__":
    key = jax.random.PRNGKey(0)
    # NCHW input: batch=2, channels=4, spatial=16x16
    x = jax.random.normal(key, (2, 4, 16, 16), dtype=jnp.float32)

    # CustomLayer instance 1: func with positional arg + kwarg (elementwise)
    layer1 = CustomLayer(pallas_affine_relu, 1.5, bias=0.25)
    y1 = jax.block_until_ready(layer1(x))
    ref1 = jnp.maximum(x * 1.5 + 0.25, 0.0)
    assert y1.shape == x.shape
    assert jnp.allclose(y1, ref1, atol=1e-6), "affine_relu mismatch"

    # CustomLayer instance 2: softmax over last dim (packed small-W path)
    layer2 = CustomLayer(pallas_softmax_lastdim, dim=-1)
    y2 = jax.block_until_ready(layer2(x))
    ref2 = jax.nn.softmax(x, axis=-1)
    assert y2.shape == x.shape
    assert jnp.allclose(y2, ref2, atol=1e-5), "softmax mismatch"

    key2 = jax.random.PRNGKey(1)

    # Affine: ragged total size (210 elems) -> copy-free (1, n) fallback path
    xa = jax.random.normal(key2, (2, 3, 5, 7), dtype=jnp.float32)
    ya = jax.block_until_ready(pallas_affine_relu(xa, 2.0, bias=-0.1))
    assert jnp.allclose(ya, jnp.maximum(xa * 2.0 - 0.1, 0.0), atol=1e-6)

    # Affine: bigger tensor -> 2-D lane-dense path, >=2 grid steps, ragged
    # last row-block handled in-kernel (no pad copies)
    xb = jax.random.normal(key2, (5, 8, 1024), dtype=jnp.float32)
    yb = jax.block_until_ready(pallas_affine_relu(xb, 0.5, bias=1.0))
    assert jnp.allclose(yb, jnp.maximum(xb * 0.5 + 1.0, 0.0), atol=1e-6)

    # Softmax: W=12 (non-divisor of 128) -> -inf-padded packed path
    xs = jax.random.normal(key2, (2, 4, 16, 12), dtype=jnp.float32)
    ys = jax.block_until_ready(pallas_softmax_lastdim(xs, dim=-1))
    assert jnp.allclose(ys, jax.nn.softmax(xs, axis=-1), atol=1e-5)

    # Softmax: row count not a multiple of the pack factor (tail-pad branch)
    xt = jax.random.normal(key2, (3, 5, 16), dtype=jnp.float32)
    yt = jax.block_until_ready(pallas_softmax_lastdim(xt, dim=-1))
    assert jnp.allclose(yt, jax.nn.softmax(xt, axis=-1), atol=1e-5)

    # Softmax: W=200 > 128 -> general row-tiled path (lane-padded sizing fix)
    xg = jax.random.normal(key2, (4, 8, 200), dtype=jnp.float32)
    yg = jax.block_until_ready(pallas_softmax_lastdim(xg, dim=-1))
    assert jnp.allclose(yg, jax.nn.softmax(xg, axis=-1), atol=1e-5)

    print("KERNEL_OK")
</pallas_src>

<mosaic_0001>
module attributes {stable_mosaic.version = 11 : i64} {
  func.func @_affine_relu_kernel(%arg0: i32, %arg1: memref<2xf32, #tpu.memory_space<smem>>, %arg2: memref<2x1024xf32, #tpu.memory_space<vmem>>, %arg3: memref<2x1024xf32, #tpu.memory_space<vmem>>) attributes {dimension_semantics = [#tpu.dimension_semantics<parallel>], iteration_bounds = array<i64: 1>, scalar_prefetch = 0 : i64, scratch_operands = 0 : i64, tpu.core_type = #tpu.core_type<tc>, window_params = [{transform_indices = @transform_0, window_bounds = array<i64: 2>}, {transform_indices = @transform_1, window_bounds = array<i64: 2, 1024>}, {transform_indices = @transform_2, window_bounds = array<i64: 2, 1024>}]} {
    %c0 = arith.constant 0 : index
    %0 = memref.load %arg1[%c0] : memref<2xf32, #tpu.memory_space<smem>>
    %c1 = arith.constant 1 : index
    %1 = memref.load %arg1[%c1] : memref<2xf32, #tpu.memory_space<smem>>
    %c0_0 = arith.constant 0 : index
    %c0_1 = arith.constant 0 : index
    %2 = vector.load %arg2[%c0_0, %c0_1] : memref<2x1024xf32, #tpu.memory_space<vmem>>, vector<2x1024xf32>
    %3 = vector.broadcast %0 : f32 to vector<2x1024xf32>
    %4 = arith.mulf %2, %3 : vector<2x1024xf32>
    %5 = vector.broadcast %1 : f32 to vector<2x1024xf32>
    %6 = arith.addf %4, %5 : vector<2x1024xf32>
    %cst = arith.constant 0.000000e+00 : f32
    %7 = vector.broadcast %cst : f32 to vector<2x1024xf32>
    %8 = arith.maximumf %6, %7 : vector<2x1024xf32>
    %c0_2 = arith.constant 0 : index
    %c0_3 = arith.constant 0 : index
    %9 = vector.load %arg3[%c0_2, %c0_3] : memref<2x1024xf32, #tpu.memory_space<vmem>>, vector<2x1024xf32>
    tpu.vector_store %arg3[%c0_2, %c0_3], %8 {strides = array<i32>} : memref<2x1024xf32, #tpu.memory_space<vmem>>, vector<2x1024xf32>,
    return
  }
  func.func @transform_0(%arg0: i32) -> i32 {
    %c0_i32 = arith.constant 0 : i32
    %c0_i32_0 = arith.constant 0 : i32
    return %c0_i32 : i32
  }
  func.func @transform_1(%arg0: i32) -> (i32, i32) {
    %c0_i32 = arith.constant 0 : i32
    %c0_i32_0 = arith.constant 0 : i32
    return %arg0, %c0_i32 : i32, i32
  }
  func.func @transform_2(%arg0: i32) -> (i32, i32) {
    %c0_i32 = arith.constant 0 : i32
    %c0_i32_0 = arith.constant 0 : i32
    return %arg0, %c0_i32 : i32, i32
  }
}

</mosaic_0001>

<llo_original>
// kernel: tpu_custom_call.1
$region0: #{tpu_custom_call.1}
  #allocation0 [shape = 'u32[]', space=smem, size = 0x4, offset = 0x4, fixed_abs, tag = 'smem constant byte address 0x4 - core index']
  #allocation1 [shape = 'u32[144,128]{1,0:T(1,128)}', space=vmem, size = 0x12000, scoped, tag = 'internal scratch']
  %s0 = inlined_call_operand.hbm [shape: f32[2], index: 0, kind: input, shape index: {}]
  %s1 = inlined_call_operand.hbm [shape: f32[2,1024], index: 1, kind: input, shape index: {}]
  %s2 = inlined_call_operand.hbm [shape: f32[2,1024], index: 2, kind: output, shape index: {}]
  %s3 = sld [smem:[#allocation0]]
  $region26: #{tpu_custom_call.1} parent=0
    _
  %s5 = ssub.s32 1, %s3
  %s6 = scalar_select 0, %s5, %s3
  $region1: #{tpu_custom_call.1} parent=0
    #allocation2 [shape = 'u8[512]{0}', space=smem, size = 0x200, scoped, tag = 'input window, operand 0, single buffered']
    #allocation3 [shape = 's32[1]{0}', space=sflag, size = 0x4, scoped, tag = 'scoped memory for tpu_custom_call.1']
    #allocation4 [shape = 's32[1]{0}', space=sflag, size = 0x4, scoped, tag = 'scoped memory for tpu_custom_call.1']
    #allocation5 [shape = 's32[1]{0}', space=sflag, size = 0x4, scoped, tag = 'scoped memory for tpu_custom_call.1']
    #allocation6 [shape = 'u8[8192]{0}', space=vmem, size = 0x2000, scoped, tag = 'input window, operand 1, single buffered']
    #allocation7 [shape = 'u8[8192]{0}', space=vmem, size = 0x2000, scoped, tag = 'output window, operand 0, single buffered']
    %7 = vsyncpa [#allocation5], 0
    %8 = vsyncpa [#allocation3], 0
    %9 = vsyncpa [#allocation4], 0
    // Predicated region
    $region2: #{tpu_custom_call.1} parent=1 // pred_check
      _
    $region3: #{tpu_custom_call.1} parent=1 // pred_check_branch
      %11 = sbr.rel (0) target = $region5
    $region4: #{tpu_custom_call.1} parent=1 // pred_region
      %s13 = ssub.s32 16, 16
      %14 = vsyncadd [#allocation5], %s13
      %17 = dma.hbm_to_smem %s0, 16, [#allocation2], [#allocation5]
    $region5: #{tpu_custom_call.1} parent=1 // pred_fallthru
      _
    // Predicated region
    $region6: #{tpu_custom_call.1} parent=1 // pred_check
      _
    $region7: #{tpu_custom_call.1} parent=1 // pred_check_branch
      %19 = sbr.rel (0) target = $region9
    $region8: #{tpu_custom_call.1} parent=1 // pred_region
      %s21 = ssub.s32 256, 256
      %22 = vsyncadd [#allocation3], %s21
      %s24 = sshll.u32 [#allocation6], 4
      %s25 = int_to_ptr.vmem [resolvable:$true] %s24
      %27 = dma.hbm_to_vmem [thread:$0]  %s1, 256, %s25, [#allocation3]
    $region9: #{tpu_custom_call.1} parent=1 // pred_fallthru
      _
    // Predicated region
    $region10: #{tpu_custom_call.1} parent=1 // pred_check
      _
    $region11: #{tpu_custom_call.1} parent=1 // pred_check_branch
      %29 = sbr.rel (0) target = $region13
    $region12: #{tpu_custom_call.1} parent=1 // pred_region
      %30 = dma.done [#allocation5], 16
    $region13: #{tpu_custom_call.1} parent=1 // pred_fallthru
      _
    // Predicated region
    $region14: #{tpu_custom_call.1} parent=1 // pred_check
      _
    $region15: #{tpu_custom_call.1} parent=1 // pred_check_branch
      %32 = sbr.rel (0) target = $region17
    $region16: #{tpu_custom_call.1} parent=1 // pred_region
      %33 = dma.done [#allocation3], 256
    $region17: #{tpu_custom_call.1} parent=1 // pred_fallthru
      _
    %34 = sfence
    %s35 = sld [smem:[#allocation2]]
    %s36 = sld [smem:[#allocation2 + $0x1]]
    %v37 = vld [vmem:[#allocation6] sm:$0xff]
    %v38 = vld [vmem:[#allocation6 + $0x8] sm:$0xff]
    %v39 = vstv %s35
    %v40 = vmul.f32 %v37, %v39
    %v41 = vmul.f32 %v38, %v39
    %v42 = vstv %s36
    %v43 = vadd.f32 %v40, %v42
    %v44 = vadd.f32 %v41, %v42
    %v45 = vmax.f32 %v43, 0.0
    %v46 = vmax.f32 %v44, 0.0
    %47 = vst [vmem:[#allocation7] sm:$0xff] %v45
    %48 = vst [vmem:[#allocation7 + $0x8] sm:$0xff] %v46
    // Predicated region
    $region18: #{tpu_custom_call.1} parent=1 // pred_check
      _
    $region19: #{tpu_custom_call.1} parent=1 // pred_check_branch
      %50 = sbr.rel (0) target = $region21
    $region20: #{tpu_custom_call.1} parent=1 // pred_region
      %s52 = ssub.s32 256, 256
      %53 = vsyncadd [#allocation4], %s52
      %s55 = sshll.u32 [#allocation7], 4
      %s56 = int_to_ptr.vmem [resolvable:$true] %s55
      %58 = dma.vmem_to_hbm [thread:$0]  %s56, 256, %s2, [#allocation4]
    $region21: #{tpu_custom_call.1} parent=1 // pred_fallthru
      _
    // Predicated region
    $region22: #{tpu_custom_call.1} parent=1 // pred_check
      _
    $region23: #{tpu_custom_call.1} parent=1 // pred_check_branch
      %60 = sbr.rel (0) target = $region25
    $region24: #{tpu_custom_call.1} parent=1 // pred_region
      %61 = dma.done [#allocation4], 256
    $region25: #{tpu_custom_call.1} parent=1 // pred_fallthru
      _
    %62 = vsyncpa [#allocation3], 1
    %63 = vsyncpa [#allocation4], 1
    %64 = vsyncpa [#allocation5], 1

</llo_original>
